<compile_context>
chip_gen: v7x
topology: tpu7x:2x2x1
jax: 0.10.0
libtpu: 0.0.40
codegen_flags: <defaults>
</compile_context>

<pallas_src>
import math
import functools

import jax
import jax.numpy as jnp
from jax import lax
from jax.experimental import pallas as pl
from jax.experimental.pallas import tpu as pltpu


def _round_up(a, b):
    return (a + b - 1) // b * b


def _conv1d_kernel(x_ref, w_ref, b_ref, o_ref, *, ksize, dilation, l_out):
    # x_ref: (1, 1, L_pad_al, Cg)   one (group, batch) slab, NLC layout
    # w_ref: (1, K, Cg, tco)        per-group weight, C_out tile (lane-dense)
    # b_ref: (1, 1, tco)            bias row (zeros when use_bias=False)
    # o_ref: (1, 1, l_out, tco)     dense (stride-1) output rows
    acc = jnp.zeros(o_ref.shape[2:], dtype=jnp.float32)
    for k in range(ksize):                                  # K is small, unrolled
        start = k * dilation
        xk = x_ref[0, 0, start:start + l_out, :]            # (l_out, Cg) shifted window
        wk = w_ref[0, k, :, :]                              # (Cg, tco)
        acc = acc + jnp.dot(xk, wk, preferred_element_type=jnp.float32)
    o_ref[0, 0, :, :] = (acc + b_ref[0, :, :]).astype(o_ref.dtype)


def conv1d_pallas(x, weight, bias=None, *, stride=1, padding=0, dilation=1,
                  groups=1, compute_dtype=None):
    """F.conv1d-equivalent forward. x: (N, C_in, L), weight: (C_out, C_in//g, K)."""
    N, C_in, L = x.shape
    C_out, Cg, K = weight.shape
    G = int(groups)
    assert C_in == Cg * G and C_out % G == 0
    Co_g = C_out // G
    s, p, d = int(stride), int(padding), int(dilation)

    out_dtype = x.dtype

    # ---- geometry ---------------------------------------------------------
    L_padded = L + 2 * p
    halo = d * (K - 1)
    L_out = (L_padded - halo - 1) // s + 1          # true conv output length
    L_dense = L_padded - halo                       # stride-1 (dense) output length
    L_dense_al = _round_up(max(L_dense, 1), 8)      # sublane-aligned output rows
    L_pad_al = L_dense_al + halo                    # input rows the kernel needs

    Co_pad = _round_up(Co_g, 128)                   # lane-dense output channels
    tco = 256 if Co_pad % 256 == 0 else 128         # lane tile (multiple of 128)
    n_co = Co_pad // tco

    # ---- rearrange operands (one pass each, no K-fold duplication) --------
    # x: (N, C_in, L) -> (G, N, L, Cg) -> zero-pad L to L_pad_al
    xg = x.reshape(N, G, Cg, L).transpose(1, 0, 3, 2)
    xg = jnp.pad(xg, ((0, 0), (0, 0), (p, L_pad_al - L - p), (0, 0)))

    # weight: (C_out, Cg, K) -> (G, K, Cg, Co_g) -> pad C_out tile to Co_pad
    wg = weight.reshape(G, Co_g, Cg, K).transpose(0, 3, 2, 1)
    wg = jnp.pad(wg, ((0, 0), (0, 0), (0, 0), (0, Co_pad - Co_g)))

    # bias: (C_out,) -> (G, 1, Co_pad) in f32 (zeros when no bias)
    if bias is None:
        bg = jnp.zeros((G, 1, Co_pad), dtype=jnp.float32)
    else:
        bg = jnp.pad(bias.astype(jnp.float32).reshape(G, 1, Co_g),
                     ((0, 0), (0, 0), (0, Co_pad - Co_g)))

    if compute_dtype is not None:                   # e.g. jnp.bfloat16 on v6e/v7x
        xg = xg.astype(compute_dtype)
        wg = wg.astype(compute_dtype)

    # ---- pallas call -------------------------------------------------------
    grid = (G, n_co, N)                             # batch innermost: x streams,
                                                    # weight/bias blocks stay resident
    kernel = functools.partial(_conv1d_kernel, ksize=K, dilation=d, l_out=L_dense_al)

    itemsize = lambda a: jnp.dtype(a.dtype).itemsize
    flops = 2 * G * N * L_dense_al * Cg * K * Co_pad
    bytes_accessed = (xg.size * itemsize(xg) + wg.size * itemsize(wg)
                      + bg.size * itemsize(bg)
                      + G * N * L_dense_al * Co_pad * jnp.dtype(out_dtype).itemsize)

    out_dense = pl.pallas_call(
        kernel,
        out_shape=jax.ShapeDtypeStruct((G, N, L_dense_al, Co_pad), out_dtype),
        grid_spec=pltpu.PrefetchScalarGridSpec(
            num_scalar_prefetch=0,
            grid=grid,
            in_specs=[
                pl.BlockSpec((1, 1, L_pad_al, Cg), lambda g, c, n: (g, n, 0, 0)),
                pl.BlockSpec((1, K, Cg, tco), lambda g, c, n: (g, 0, 0, c)),
                pl.BlockSpec((1, 1, tco), lambda g, c, n: (g, 0, c)),
            ],
            out_specs=pl.BlockSpec((1, 1, L_dense_al, tco),
                                   lambda g, c, n: (g, n, 0, c)),
        ),
        compiler_params=pltpu.CompilerParams(
            dimension_semantics=("parallel", "parallel", "parallel"),
            vmem_limit_bytes=64 * 1024 * 1024),
        cost_estimate=pl.CostEstimate(flops=flops, transcendentals=0,
                                      bytes_accessed=bytes_accessed),
    )(xg, wg, bg)

    # ---- strip padding, apply stride, back to NCL (single transpose) -------
    out = out_dense[:, :, ::s, :][:, :, :L_out, :Co_g]      # (G, N, L_out, Co_g)
    out = out.transpose(1, 0, 3, 2).reshape(N, C_out, L_out)
    return out


class MetaConv1dLayerPallas:
    """JAX/Pallas equivalent of MetaConv1dLayer's forward pass (F.conv1d)."""

    def __init__(self, in_channels, out_channels, kernel_size, stride=1,
                 padding=0, use_bias=True, groups=1, dilation_rate=1,
                 key=None, dtype=jnp.float32, compute_dtype=None):
        self.in_channels = int(in_channels)
        self.out_channels = int(out_channels)
        self.kernel_size = int(kernel_size)
        self.stride = int(stride)
        self.padding = int(padding)
        self.dilation_rate = int(dilation_rate)
        self.use_bias = use_bias
        self.groups = int(groups)
        self.compute_dtype = compute_dtype

        if key is None:
            key = jax.random.PRNGKey(0)
        # Weight shape follows F.conv1d's requirement (C_out, C_in//groups, K);
        # the PyTorch module as written only supports groups=1 with its stored
        # weight, this generalizes while keeping identical semantics for g=1.
        cin_g = self.in_channels // self.groups
        fan_in = cin_g * self.kernel_size
        fan_out = self.out_channels * self.kernel_size
        bound = math.sqrt(6.0 / (fan_in + fan_out))       # xavier_uniform_
        self.weight = jax.random.uniform(
            key, (self.out_channels, cin_g, self.kernel_size),
            minval=-bound, maxval=bound, dtype=dtype)
        self.bias = jnp.zeros((self.out_channels,), dtype=dtype) if use_bias else None

    def __call__(self, x, params=None):
        if params is not None:
            weight = params["weight"]
            bias = params.get("bias", None) if self.use_bias else None
        else:
            weight, bias = self.weight, self.bias
        return conv1d_pallas(
            x, weight, bias,
            stride=self.stride, padding=self.padding,
            dilation=self.dilation_rate, groups=self.groups,
            compute_dtype=self.compute_dtype)


if __name__ == "__main__":
    key = jax.random.PRNGKey(0)
    k_x1, k_w1, k_x2, k_w2 = jax.random.split(key, 4)

    # ---- test 1: plain conv (bias, stride 1, padding 1) --------------------
    N, C_in, L = 2, 4, 16
    C_out, K = 8, 3
    stride, padding, dilation, groups = 1, 1, 1, 1

    x = jax.random.normal(k_x1, (N, C_in, L), dtype=jnp.float32)
    layer = MetaConv1dLayerPallas(C_in, C_out, K, stride=stride, padding=padding,
                                  use_bias=True, groups=groups,
                                  dilation_rate=dilation, key=k_w1)
    out = jax.block_until_ready(layer(x))

    ref = lax.conv_general_dilated(
        x, layer.weight, window_strides=(stride,), padding=[(padding, padding)],
        rhs_dilation=(dilation,), feature_group_count=groups,
        dimension_numbers=("NCH", "OIH", "NCH"),
        precision=lax.Precision.HIGHEST)
    ref = ref + layer.bias[None, :, None]

    L_out = (L + 2 * padding - dilation * (K - 1) - 1) // stride + 1
    assert out.shape == (N, C_out, L_out), out.shape
    assert jnp.allclose(out, ref, atol=1e-4, rtol=1e-4)

    # ---- test 2: grouped, strided, dilated, no bias ------------------------
    N2, C_in2, L2 = 2, 6, 19
    C_out2, K2 = 4, 3
    stride2, padding2, dilation2, groups2 = 2, 2, 2, 2

    x2 = jax.random.normal(k_x2, (N2, C_in2, L2), dtype=jnp.float32)
    layer2 = MetaConv1dLayerPallas(C_in2, C_out2, K2, stride=stride2,
                                   padding=padding2, use_bias=False,
                                   groups=groups2, dilation_rate=dilation2,
                                   key=k_w2)
    out2 = jax.block_until_ready(layer2(x2))

    ref2 = lax.conv_general_dilated(
        x2, layer2.weight, window_strides=(stride2,),
        padding=[(padding2, padding2)], rhs_dilation=(dilation2,),
        feature_group_count=groups2,
        dimension_numbers=("NCH", "OIH", "NCH"),
        precision=lax.Precision.HIGHEST)

    L_out2 = (L2 + 2 * padding2 - dilation2 * (K2 - 1) - 1) // stride2 + 1
    assert out2.shape == (N2, C_out2, L_out2), out2.shape
    assert jnp.allclose(out2, ref2, atol=1e-4, rtol=1e-4)

    print("KERNEL_OK")
</pallas_src>

<mosaic_0001>
module attributes {stable_mosaic.version = 11 : i64} {
  func.func @_conv1d_kernel(%arg0: i32, %arg1: i32, %arg2: i32, %arg3: memref<1x1x18x4xf32, #tpu.memory_space<vmem>>, %arg4: memref<1x3x4x128xf32, #tpu.memory_space<vmem>>, %arg5: memref<1x1x128xf32, #tpu.memory_space<vmem>>, %arg6: memref<1x1x16x128xf32, #tpu.memory_space<vmem>>) attributes {dimension_semantics = [#tpu.dimension_semantics<parallel>, #tpu.dimension_semantics<parallel>, #tpu.dimension_semantics<parallel>], iteration_bounds = array<i64: 1, 1, 2>, scalar_prefetch = 0 : i64, scratch_operands = 0 : i64, tpu.core_type = #tpu.core_type<tc>, window_params = [{transform_indices = @transform_0, window_bounds = array<i64: 1, 1, 18, 4>}, {transform_indices = @transform_1, window_bounds = array<i64: 1, 3, 4, 128>}, {transform_indices = @transform_2, window_bounds = array<i64: 1, 1, 128>}, {transform_indices = @transform_3, window_bounds = array<i64: 1, 1, 16, 128>}]} {
    %cst = arith.constant 0.000000e+00 : f32
    %0 = vector.broadcast %cst : f32 to vector<16x128xf32>
    %c0 = arith.constant 0 : index
    %c0_0 = arith.constant 0 : index
    %c0_1 = arith.constant 0 : index
    %c0_2 = arith.constant 0 : index
    %1 = vector.load %arg3[%c0, %c0_0, %c0_1, %c0_2] : memref<1x1x18x4xf32, #tpu.memory_space<vmem>>, vector<1x1x16x4xf32>
    %2 = vector.shape_cast %1 : vector<1x1x16x4xf32> to vector<16x4xf32>
    %c0_3 = arith.constant 0 : index
    %c0_4 = arith.constant 0 : index
    %c0_5 = arith.constant 0 : index
    %c0_6 = arith.constant 0 : index
    %3 = vector.load %arg4[%c0_3, %c0_4, %c0_5, %c0_6] : memref<1x3x4x128xf32, #tpu.memory_space<vmem>>, vector<1x1x4x128xf32>
    %4 = vector.shape_cast %3 : vector<1x1x4x128xf32> to vector<4x128xf32>
    %cst_7 = arith.constant dense<0.000000e+00> : vector<16x128xf32>
    %5 = tpu.matmul %2, %4, %cst_7 {dimension_numbers = #tpu.dot_dimension_numbers<[1], [0], [0], [1], [0, 0, 1, 1], [], []>} : vector<16x4xf32>, vector<4x128xf32>, vector<16x128xf32> -> vector<16x128xf32>
    %6 = arith.addf %0, %5 : vector<16x128xf32>
    %c0_8 = arith.constant 0 : index
    %c0_9 = arith.constant 0 : index
    %c1 = arith.constant 1 : index
    %c0_10 = arith.constant 0 : index
    %7 = vector.load %arg3[%c0_8, %c0_9, %c1, %c0_10] : memref<1x1x18x4xf32, #tpu.memory_space<vmem>>, vector<1x1x16x4xf32>
    %8 = vector.shape_cast %7 : vector<1x1x16x4xf32> to vector<16x4xf32>
    %c0_11 = arith.constant 0 : index
    %c1_12 = arith.constant 1 : index
    %c0_13 = arith.constant 0 : index
    %c0_14 = arith.constant 0 : index
    %9 = vector.load %arg4[%c0_11, %c1_12, %c0_13, %c0_14] : memref<1x3x4x128xf32, #tpu.memory_space<vmem>>, vector<1x1x4x128xf32>
    %10 = vector.shape_cast %9 : vector<1x1x4x128xf32> to vector<4x128xf32>
    %cst_15 = arith.constant dense<0.000000e+00> : vector<16x128xf32>
    %11 = tpu.matmul %8, %10, %cst_15 {dimension_numbers = #tpu.dot_dimension_numbers<[1], [0], [0], [1], [0, 0, 1, 1], [], []>} : vector<16x4xf32>, vector<4x128xf32>, vector<16x128xf32> -> vector<16x128xf32>
    %12 = arith.addf %6, %11 : vector<16x128xf32>
    %c0_16 = arith.constant 0 : index
    %c0_17 = arith.constant 0 : index
    %c2 = arith.constant 2 : index
    %c0_18 = arith.constant 0 : index
    %13 = vector.load %arg3[%c0_16, %c0_17, %c2, %c0_18] : memref<1x1x18x4xf32, #tpu.memory_space<vmem>>, vector<1x1x16x4xf32>
    %14 = vector.shape_cast %13 : vector<1x1x16x4xf32> to vector<16x4xf32>
    %c0_19 = arith.constant 0 : index
    %c2_20 = arith.constant 2 : index
    %c0_21 = arith.constant 0 : index
    %c0_22 = arith.constant 0 : index
    %15 = vector.load %arg4[%c0_19, %c2_20, %c0_21, %c0_22] : memref<1x3x4x128xf32, #tpu.memory_space<vmem>>, vector<1x1x4x128xf32>
    %16 = vector.shape_cast %15 : vector<1x1x4x128xf32> to vector<4x128xf32>
    %cst_23 = arith.constant dense<0.000000e+00> : vector<16x128xf32>
    %17 = tpu.matmul %14, %16, %cst_23 {dimension_numbers = #tpu.dot_dimension_numbers<[1], [0], [0], [1], [0, 0, 1, 1], [], []>} : vector<16x4xf32>, vector<4x128xf32>, vector<16x128xf32> -> vector<16x128xf32>
    %18 = arith.addf %12, %17 : vector<16x128xf32>
    %c0_24 = arith.constant 0 : index
    %c0_25 = arith.constant 0 : index
    %c0_26 = arith.constant 0 : index
    %19 = vector.load %arg5[%c0_24, %c0_25, %c0_26] : memref<1x1x128xf32, #tpu.memory_space<vmem>>, vector<1x1x128xf32>
    %20 = vector.shape_cast %19 : vector<1x1x128xf32> to vector<1x128xf32>
    %21 = vector.broadcast %20 : vector<1x128xf32> to vector<16x128xf32>
    %22 = arith.addf %18, %21 : vector<16x128xf32>
    %c0_27 = arith.constant 0 : index
    %c0_28 = arith.constant 0 : index
    %c0_29 = arith.constant 0 : index
    %c0_30 = arith.constant 0 : index
    %23 = vector.load %arg6[%c0_27, %c0_28, %c0_29, %c0_30] : memref<1x1x16x128xf32, #tpu.memory_space<vmem>>, vector<1x1x16x128xf32>
    %24 = vector.shape_cast %23 : vector<1x1x16x128xf32> to vector<16x128xf32>
    %25 = vector.shape_cast %22 : vector<16x128xf32> to vector<1x1x16x128xf32>
    tpu.vector_store %arg6[%c0_27, %c0_28, %c0_29, %c0_30], %25 {strides = array<i32>} : memref<1x1x16x128xf32, #tpu.memory_space<vmem>>, vector<1x1x16x128xf32>,
    return
  }
  func.func @transform_0(%arg0: i32, %arg1: i32, %arg2: i32) -> (i32, i32, i32, i32) {
    %c0_i32 = arith.constant 0 : i32
    %c0_i32_0 = arith.constant 0 : i32
    %c0_i32_1 = arith.constant 0 : i32
    return %arg0, %arg2, %c0_i32, %c0_i32_0 : i32, i32, i32, i32
  }
  func.func @transform_1(%arg0: i32, %arg1: i32, %arg2: i32) -> (i32, i32, i32, i32) {
    %c0_i32 = arith.constant 0 : i32
    %c0_i32_0 = arith.constant 0 : i32
    %c0_i32_1 = arith.constant 0 : i32
    return %arg0, %c0_i32, %c0_i32_0, %arg1 : i32, i32, i32, i32
  }
  func.func @transform_2(%arg0: i32, %arg1: i32, %arg2: i32) -> (i32, i32, i32) {
    %c0_i32 = arith.constant 0 : i32
    %c0_i32_0 = arith.constant 0 : i32
    return %arg0, %c0_i32, %arg1 : i32, i32, i32
  }
  func.func @transform_3(%arg0: i32, %arg1: i32, %arg2: i32) -> (i32, i32, i32, i32) {
    %c0_i32 = arith.constant 0 : i32
    %c0_i32_0 = arith.constant 0 : i32
    return %arg0, %arg2, %c0_i32, %arg1 : i32, i32, i32, i32
  }
}

</mosaic_0001>

<llo_original>
// kernel: tpu_custom_call.1
$region0: #{tpu_custom_call.1}
  #allocation0 [shape = 'u32[]', space=smem, size = 0x4, offset = 0x4, fixed_abs, tag = 'smem constant byte address 0x4 - core index']
  #allocation1 [shape = 'u32[144,128]{1,0:T(1,128)}', space=vmem, size = 0x12000, scoped, tag = 'internal scratch']
  %s0 = inlined_call_operand.hbm [shape: f32[1,2,18,4], index: 0, kind: input, shape index: {}]
  %s1 = inlined_call_operand.hbm [shape: f32[1,3,4,128], index: 1, kind: input, shape index: {}]
  %s2 = inlined_call_operand.hbm [shape: f32[1,1,128], index: 2, kind: input, shape index: {}]
  %s3 = inlined_call_operand.hbm [shape: f32[1,2,16,128], index: 3, kind: output, shape index: {}]
  %s4 = sld [smem:[#allocation0]]
  $region57: #{tpu_custom_call.1} parent=0
    _
  %s6 = ssub.s32 1, %s4
  %s7 = scalar_select 0, %s6, %s4
  $region1: #{tpu_custom_call.1} parent=0
    #allocation2 [shape = 'u8[24576]{0}', space=vmem, size = 0x6000, scoped, tag = 'input window, operand 0']
    #allocation3 [shape = 's32[2]{0}', space=sflag, size = 0x8, scoped, tag = 'scoped memory for tpu_custom_call.1']
    #allocation4 [shape = 's32[2]{0}', space=sflag, size = 0x8, scoped, tag = 'scoped memory for tpu_custom_call.1']
    #allocation5 [shape = 'u8[6144]{0}', space=vmem, size = 0x1800, scoped, tag = 'input window, operand 1, single buffered']
    #allocation6 [shape = 's32[1]{0}', space=sflag, size = 0x4, scoped, tag = 'scoped memory for tpu_custom_call.1']
    #allocation7 [shape = 'u8[512]{0}', space=vmem, size = 0x400, scoped, tag = 'input window, operand 2, single buffered']
    #allocation8 [shape = 'u8[16384]{0}', space=vmem, size = 0x4000, scoped, tag = 'output window, operand 0']
    %8 = vsyncpa [#allocation3], 0
    %s9 = scalar_lea.sflag [#allocation3], 1
    %10 = vsyncpa %s9, 0
    %11 = vsyncpa [#allocation6], 0
    %12 = vsyncpa [#allocation4], 0
    %s13 = scalar_lea.sflag [#allocation4], 1
    %14 = vsyncpa %s13, 0
    loop: start=0, step=1, limit=4
    $region2: #{tpu_custom_call.1} parent=1 // loop_pre_header
      _
    $region3: #{tpu_custom_call.1} parent=1 // loop_header
      %s16 = sphi 0, %s20
      %p17 = scmp.ge.s32.totalorder %s16, 4
      %s23 = sphi 0, %s42
      %s24 = sphi 0, %s38
      %s25 = sphi 0, %s34
      %s26 = sphi 0, %s23
      %s27 = sphi 0, %s24
      %s28 = sphi 0, %s25
      %s29 = sphi 0, %s26
      %s30 = sphi 0, %s27
      %s31 = sphi 0, %s28
      %s47 = sphi 0, %s49
      %s50 = sphi 0, %s47
      %s51 = sphi 0, %s50
      %s67 = sphi 0, %s51
      %s75 = sphi 0, %s77
      %s78 = sphi 0, %s75
      %s79 = sphi 0, %s78
      %s95 = sphi 0, %s79
      %s103 = sphi 0, %s105
      %s106 = sphi 0, %s103
      %s107 = sphi 0, %s106
      %s123 = sphi 0, %s107
      %s133 = sphi 0, %s135
      %s136 = sphi 0, %s133
      %s137 = sphi 0, %s136
      %s153 = sphi 0, %s137
    $region4: #{tpu_custom_call.1} parent=1 // loop_header_branch
      %19 = sbr.rel (%p17) target = $region8
    $region5: #{tpu_custom_call.1} parent=1 // loop_body
      %s21 = ssub.s32 %s16, 1
      %s22 = ssub.s32 %s16, 2
      %s32 = sadd.s32 1, %s25
      %p33 = scmp.ge.s32.totalorder %s32, 2
      %s34 = scalar_select %p33, 0, %s32
      %s35 = sadd.s32 1, %s24
      %s36 = scalar_select %p33, %s35, %s24
      %p37 = scmp.ge.s32.totalorder %s36, 1
      %s38 = scalar_select %p37, 0, %s36
      %s39 = sadd.s32 1, %s23
      %s40 = scalar_select %p37, %s39, %s23
      %p41 = scmp.ge.s32.totalorder %s40, 1
      %s42 = scalar_select %p41, 0, %s40
      %s43 = ssub.s32 %s23, %s42
      %s44 = ssub.s32 %s25, %s34
      %s45 = sor.u32 %s43, %s44
      %p46 = scmp.eq.s32.totalorder %s45, 0
      %s48 = sadd.s32 %s47, 1
      %s49 = scalar_select %p46, %s47, %s48
      %p52 = pneg %p46
      %p53 = scmp.eq.s32.totalorder %s16, 1
      %p54 = por %p52, %p53
      %p55 = scmp.ne.s32.totalorder %s47, %s50
      %p56 = scmp.eq.s32.totalorder %s16, 0
      %p57 = por %p55, %p56
      %p58 = scmp.ne.s32.totalorder %s47, %s50
      %p59 = scmp.eq.s32.totalorder %s21, 1
      %p60 = por %p58, %p59
      %p61 = scmp.ne.s32.totalorder %s50, %s51
      %p62 = scmp.eq.s32.totalorder %s21, 0
      %p63 = por %p61, %p62
      %p64 = scmp.ne.s32.totalorder %s50, %s51
      %p65 = scmp.eq.s32.totalorder %s22, 1
      %p66 = por %p64, %p65
      %p68 = scmp.ne.s32.totalorder %s51, %s67
      %p69 = scmp.eq.s32.totalorder %s22, 0
      %p70 = por %p68, %p69
      %s71 = ssub.s32 %s23, %s42
      %s72 = ssub.s32 %s24, %s38
      %s73 = sor.u32 %s71, %s72
      %p74 = scmp.eq.s32.totalorder %s73, 0
      %s76 = sadd.s32 %s75, 1
      %s77 = scalar_select %p74, %s75, %s76
      %p80 = pneg %p74
      %p81 = scmp.eq.s32.totalorder %s16, 1
      %p82 = por %p80, %p81
      %p83 = scmp.ne.s32.totalorder %s75, %s78
      %p84 = scmp.eq.s32.totalorder %s16, 0
      %p85 = por %p83, %p84
      %p86 = scmp.ne.s32.totalorder %s75, %s78
      %p87 = scmp.eq.s32.totalorder %s21, 1
      %p88 = por %p86, %p87
      %p89 = scmp.ne.s32.totalorder %s78, %s79
      %p90 = scmp.eq.s32.totalorder %s21, 0
      %p91 = por %p89, %p90
      %p92 = scmp.ne.s32.totalorder %s78, %s79
      %p93 = scmp.eq.s32.totalorder %s22, 1
      %p94 = por %p92, %p93
      %p96 = scmp.ne.s32.totalorder %s79, %s95
      %p97 = scmp.eq.s32.totalorder %s22, 0
      %p98 = por %p96, %p97
      %s99 = ssub.s32 %s23, %s42
      %s100 = ssub.s32 %s24, %s38
      %s101 = sor.u32 %s99, %s100
      %p102 = scmp.eq.s32.totalorder %s101, 0
      %s104 = sadd.s32 %s103, 1
      %s105 = scalar_select %p102, %s103, %s104
      %p108 = pneg %p102
      %p109 = scmp.eq.s32.totalorder %s16, 1
      %p110 = por %p108, %p109
      %p111 = scmp.ne.s32.totalorder %s103, %s106
      %p112 = scmp.eq.s32.totalorder %s16, 0
      %p113 = por %p111, %p112
      %p114 = scmp.ne.s32.totalorder %s103, %s106
      %p115 = scmp.eq.s32.totalorder %s21, 1
      %p116 = por %p114, %p115
      %p117 = scmp.ne.s32.totalorder %s106, %s107
      %p118 = scmp.eq.s32.totalorder %s21, 0
      %p119 = por %p117, %p118
      %p120 = scmp.ne.s32.totalorder %s106, %s107
      %p121 = scmp.eq.s32.totalorder %s22, 1
      %p122 = por %p120, %p121
      %p124 = scmp.ne.s32.totalorder %s107, %s123
      %p125 = scmp.eq.s32.totalorder %s22, 0
      %p126 = por %p124, %p125
      %s127 = ssub.s32 %s23, %s42
      %s128 = ssub.s32 %s25, %s34
      %s129 = sor.u32 %s127, %s128
      %s130 = ssub.s32 %s24, %s38
      %s131 = sor.u32 %s129, %s130
      %p132 = scmp.eq.s32.totalorder %s131, 0
      %s134 = sadd.s32 %s133, 1
      %s135 = scalar_select %p132, %s133, %s134
      %p138 = pneg %p132
      %p139 = scmp.eq.s32.totalorder %s16, 1
      %p140 = por %p138, %p139
      %p141 = scmp.ne.s32.totalorder %s133, %s136
      %p142 = scmp.eq.s32.totalorder %s16, 0
      %p143 = por %p141, %p142
      %p144 = scmp.ne.s32.totalorder %s133, %s136
      %p145 = scmp.eq.s32.totalorder %s21, 1
      %p146 = por %p144, %p145
      %p147 = scmp.ne.s32.totalorder %s136, %s137
      %p148 = scmp.eq.s32.totalorder %s21, 0
      %p149 = por %p147, %p148
      %p150 = scmp.ne.s32.totalorder %s136, %s137
      %p151 = scmp.eq.s32.totalorder %s22, 1
      %p152 = por %p150, %p151
      %p154 = scmp.ne.s32.totalorder %s137, %s153
      %p155 = scmp.eq.s32.totalorder %s22, 0
      %p156 = por %p154, %p155
      %p157 = scmp.le.s32.totalorder 1, %s16
      %p158 = scmp.lt.s32.totalorder %s16, 3
      %p159 = pnand %p157, %p158
      %p160 = pneg %p159
      // Predicated region
      $region9: #{tpu_custom_call.1} parent=5 // pred_check
        _
      $region10: #{tpu_custom_call.1} parent=5 // pred_check_branch
        %162 = sbr.rel (%p159) target = $region12
      $region11: #{tpu_custom_call.1} parent=5 // pred_region
        %s163 = ssub.s32 %s16, 1
        // Predicated region
        $region13: #{tpu_custom_call.1} parent=11 // pred_check
          %p164 = pneg %p91
        $region14: #{tpu_custom_call.1} parent=11 // pred_check_branch
          %166 = sbr.rel (%p164) target = $region16
        $region15: #{tpu_custom_call.1} parent=11 // pred_region
          %s168 = ssub.s32 192, 192
          %169 = vsyncadd [#allocation6], %s168
          %s170 = smul.addr %s26, 3
          %s171 = sadd.s32 %s27, %s170
          %s172 = smul.addr %s171, 64
          %s173 = scalar_lea.hbm %s1, %s172
          %s174 = sshll.u32 [#allocation5], 4
          %s175 = int_to_ptr.vmem [resolvable:$true] %s174
          %180 = dma.hbm_to_vmem [thread:$0]  %s173, 192, %s175, [#allocation6], 64, 64, 4
        $region16: #{tpu_custom_call.1} parent=11 // pred_fallthru
          _
        // Predicated region
        $region17: #{tpu_custom_call.1} parent=11 // pred_check
          %p181 = pneg %p119
        $region18: #{tpu_custom_call.1} parent=11 // pred_check_branch
          %183 = sbr.rel (%p181) target = $region20
        $region19: #{tpu_custom_call.1} parent=11 // pred_region
          %s185 = ssub.s32 16, 16
          %186 = vsyncadd [#allocation6], %s185
          %s187 = sadd.s32 %s27, %s26
          %s188 = smul.addr %s187, 16
          %s189 = scalar_lea.hbm %s2, %s188
          %s191 = sshll.u32 [#allocation7], 4
          %s192 = int_to_ptr.vmem [resolvable:$true] %s191
          %194 = dma.hbm_to_vmem [thread:$0]  %s189, 16, %s192, [#allocation6]
        $region20: #{tpu_custom_call.1} parent=11 // pred_fallthru
          _
      $region12: #{tpu_custom_call.1} parent=5 // pred_fallthru
        _
      %p195 = scmp.lt.s32.totalorder %s16, 2
      // Predicated region
      $region21: #{tpu_custom_call.1} parent=5 // pred_check
        %p196 = pneg %p195
      $region22: #{tpu_custom_call.1} parent=5 // pred_check_branch
        %198 = sbr.rel (%p196) target = $region24
      $region23: #{tpu_custom_call.1} parent=5 // pred_region
        // Predicated region
        $region25: #{tpu_custom_call.1} parent=23 // pred_check
          %p199 = pneg %p57
        $region26: #{tpu_custom_call.1} parent=23 // pred_check_branch
          %201 = sbr.rel (%p199) target = $region28
        $region27: #{tpu_custom_call.1} parent=23 // pred_region
          %s202 = sand.u32 %s47, 1
          %s203 = scalar_lea.sflag [#allocation3], %s202
          %s204 = sand.u32 %s47, 1
          %s205 = smul.addr %s204, 24
          %s206 = scalar_lea.vmem [#allocation2], %s205
          %s208 = ssub.s32 384, 384
          %209 = vsyncadd %s203, %s208
          %s210 = smul.addr %s25, 3
          %s211 = smul.addr %s23, 6
          %s212 = sadd.s32 %s210, %s211
          %s213 = smul.addr %s212, 128
          %s214 = scalar_lea.hbm %s0, %s213
          %s215 = sshll.u32 %s206, 4
          %s216 = int_to_ptr.vmem [resolvable:$true] %s215
          %221 = dma.hbm_to_vmem [thread:$0]  %s214, 384, %s216, %s203, 128, 128, 8
        $region28: #{tpu_custom_call.1} parent=23 // pred_fallthru
          _
      $region24: #{tpu_custom_call.1} parent=5 // pred_fallthru
        _
      %p222 = scmp.le.s32.totalorder 1, %s16
      %p223 = scmp.lt.s32.totalorder %s16, 3
      %p224 = pnand %p222, %p223
      %p225 = pneg %p224
      // Predicated region
      $region29: #{tpu_custom_call.1} parent=5 // pred_check
        _
      $region30: #{tpu_custom_call.1} parent=5 // pred_check_branch
        %227 = sbr.rel (%p224) target = $region32
      $region31: #{tpu_custom_call.1} parent=5 // pred_region
        %s228 = ssub.s32 %s16, 1
        %s229 = sand.u32 %s50, 1
        %s230 = scalar_lea.sflag [#allocation3], %s229
        %s231 = sand.u32 %s50, 1
        %s232 = smul.addr %s231, 24
        %s233 = scalar_lea.vmem [#allocation2], %s232
        // Predicated region
        $region33: #{tpu_custom_call.1} parent=31 // pred_check
          %p234 = pneg %p63
        $region34: #{tpu_custom_call.1} parent=31 // pred_check_branch
          %236 = sbr.rel (%p234) target = $region36
        $region35: #{tpu_custom_call.1} parent=31 // pred_region
          %237 = dma.done %s230, 384
        $region36: #{tpu_custom_call.1} parent=31 // pred_fallthru
          _
        // Predicated region
        $region37: #{tpu_custom_call.1} parent=31 // pred_check
          %p238 = pneg %p91
        $region38: #{tpu_custom_call.1} parent=31 // pred_check_branch
          %240 = sbr.rel (%p238) target = $region40
        $region39: #{tpu_custom_call.1} parent=31 // pred_region
          %241 = dma.done [#allocation6], 192
        $region40: #{tpu_custom_call.1} parent=31 // pred_fallthru
          _
        // Predicated region
        $region41: #{tpu_custom_call.1} parent=31 // pred_check
          %p242 = pneg %p119
        $region42: #{tpu_custom_call.1} parent=31 // pred_check_branch
          %244 = sbr.rel (%p242) target = $region44
        $region43: #{tpu_custom_call.1} parent=31 // pred_region
          %245 = dma.done [#allocation6], 16
        $region44: #{tpu_custom_call.1} parent=31 // pred_fallthru
          _
        %s246 = sand.u32 %s50, 1
        %s247 = scalar_lea.sflag [#allocation3], %s246
        %s248 = sand.u32 %s50, 1
        %s249 = smul.addr %s248, 24
        %s250 = scalar_lea.vmem [#allocation2], %s249
        %p251 = pneg %p63
        %p252 = pneg %p60
        %p253 = pneg %p91
        %p254 = pneg %p88
        %p255 = pneg %p119
        %p256 = pneg %p116
        %p257 = pneg %p149
        %p258 = pneg %p146
        %s259 = sand.u32 %s136, 1
        %s260 = scalar_lea.sflag [#allocation4], %s259
        %s261 = sand.u32 %s136, 1
        %s262 = smul.addr %s261, 16
        %s263 = scalar_lea.vmem [#allocation8], %s262
        %v264 = vld [vmem:[%s233] sm:$0xff]
        %v265 = vld [vmem:[%s233 + $0x8] sm:$0xff]
        %v266 = vld [vmem:[#allocation5] sm:$0xf]
        %v267 = vld [vmem:[%s233 + $0x1] sm:$0xff]
        %v268 = vld [vmem:[%s233 + $0x9] sm:$0xff]
        %s269 = scalar_lea.vmem [#allocation5], 4
        %v270 = vld [vmem:[%s269] sm:$0xf]
        %vm271 = vcmask 31744
        %v273 = vsel %vm271, %v267, 0
        %v276 = vsel %vm271, %v268, 0
        %vm278 = vcmask 1043456
        %v280 = vsel %vm278, %v270, 0
        %282 = vmatprep.subr.mxu0 0.0
        %283 = vmatpush1.msra.mxu0 %v280
        %284 = vmatprep.subr.mxu0 0.0
        %285 = vmatpush1.msra.mxu0 0.0
        %286 = vmatprep.subr.mxu0 0.0
        %287 = vmatpush1.msra.mxu0 0.0
        %288 = vmatprep.subr.mxu0 0.0
        %289 = vmatpush1.msra.mxu0 0.0
        %290 = vmatprep.subr.mxu0 0.0
        %291 = vmatpush1.msra.mxu0 0.0
        %292 = vmatprep.subr.mxu0 0.0
        %293 = vmatpush1.msra.mxu0 0.0
        %294 = vmatprep.subr.mxu0 0.0
        %295 = vmatpush1.msra.mxu0 0.0
        %296 = vmatprep.subr.mxu0 0.0
        %297 = vmatpush1.msra.mxu0 0.0
        %298 = vmatprep.subr.mxu0 0.0
        %299 = vmatpush1.msra.mxu0 0.0
        %300 = vmatprep.subr.mxu0 0.0
        %301 = vmatpush1.msra.mxu0 0.0
        %302 = vmatprep.subr.mxu0 0.0
        %303 = vmatpush1.msra.mxu0 0.0
        %304 = vmatprep.subr.mxu0 0.0
        %305 = vmatpush1.msra.mxu0 0.0
        %306 = vmatprep.subr.mxu0 0.0
        %307 = vmatpush1.msra.mxu0 0.0
        %308 = vmatprep.subr.mxu0 0.0
        %309 = vmatpush1.msra.mxu0 0.0
        %310 = vmatprep.subr.mxu0 0.0
        %311 = vmatpush1.msra.mxu0 0.0
        %312 = vmatprep.subr.mxu0 0.0
        %313 = vmatpush1.msra.mxu0 0.0
        %314 = vmatprep.subr.mxu0 0.0
        %315 = vmatpush1.msra.mxu0 0.0
        %316 = vmatprep.subr.mxu0 0.0
        %317 = vmatpush1.msra.mxu0 0.0
        %318 = vmatprep.subr.mxu0 0.0
        %319 = vmatpush1.msra.mxu0 0.0
        %320 = vmatprep.subr.mxu0 0.0
        %321 = vmatpush1.msra.mxu0 0.0
        %322 = vmatprep.subr.mxu0 0.0
        %323 = vmatpush1.msra.mxu0 0.0
        %324 = vmatprep.subr.mxu0 0.0
        %325 = vmatpush1.msra.mxu0 0.0
        %326 = vmatprep.subr.mxu0 0.0
        %327 = vmatpush1.msra.mxu0 0.0
        %328 = vmatprep.subr.mxu0 0.0
        %329 = vmatpush1.msra.mxu0 0.0
        %330 = vmatprep.subr.mxu0 0.0
        %331 = vmatpush1.msra.mxu0 0.0
        %332 = vmatprep.subr.mxu0 0.0
        %333 = vmatpush1.msra.mxu0 0.0
        %334 = vmatprep.subr.mxu0 0.0
        %335 = vmatpush1.msra.mxu0 0.0
        %336 = vmatprep.subr.mxu0 0.0
        %337 = vmatpush1.msra.mxu0 0.0
        %338 = vmatprep.subr.mxu0 0.0
        %339 = vmatpush1.msra.mxu0 0.0
        %340 = vmatprep.subr.mxu0 0.0
        %341 = vmatpush1.msra.mxu0 0.0
        %342 = vmatprep.subr.mxu0 0.0
        %343 = vmatpush1.msra.mxu0 0.0
        %344 = vmatprep.subr.mxu0 0.0
        %345 = vmatpush1.msra.mxu0 0.0
        %346 = vmatprep.mubr.f32.mxu0 0.0
        %347 = vmatmul.mubr.f32.gmra.mrb[0].mxu0 %v273
        %v348 = vpop.f32.mrb[0].mxu0
        %v349 = vadd.f32 0.0, %v348
        %v350 = vpop.f32.mrb[0].mxu0
        %351 = vmatprep.mubr.f32.mxu0 0.0
        %352 = vmatmul.mubr.f32.gmra.mrb[0].mxu0 %v276
        %v353 = vpop.f32.mrb[0].mxu0
        %v354 = vadd.f32 0.0, %v353
        %v355 = vpop.f32.mrb[0].mxu0
        %356 = vdwg.mxu0
        %v358 = vsel %vm271, %v264, 0
        %v361 = vsel %vm271, %v265, 0
        %v364 = vsel %vm278, %v266, 0
        %366 = vmatprep.subr.mxu0 0.0
        %367 = vmatpush1.msra.mxu0 %v364
        %368 = vmatprep.subr.mxu0 0.0
        %369 = vmatpush1.msra.mxu0 0.0
        %370 = vmatprep.subr.mxu0 0.0
        %371 = vmatpush1.msra.mxu0 0.0
        %372 = vmatprep.subr.mxu0 0.0
        %373 = vmatpush1.msra.mxu0 0.0
        %374 = vmatprep.subr.mxu0 0.0
        %375 = vmatpush1.msra.mxu0 0.0
        %376 = vmatprep.subr.mxu0 0.0
        %377 = vmatpush1.msra.mxu0 0.0
        %378 = vmatprep.subr.mxu0 0.0
        %379 = vmatpush1.msra.mxu0 0.0
        %380 = vmatprep.subr.mxu0 0.0
        %381 = vmatpush1.msra.mxu0 0.0
        %382 = vmatprep.subr.mxu0 0.0
        %383 = vmatpush1.msra.mxu0 0.0
        %384 = vmatprep.subr.mxu0 0.0
        %385 = vmatpush1.msra.mxu0 0.0
        %386 = vmatprep.subr.mxu0 0.0
        %387 = vmatpush1.msra.mxu0 0.0
        %388 = vmatprep.subr.mxu0 0.0
        %389 = vmatpush1.msra.mxu0 0.0
        %390 = vmatprep.subr.mxu0 0.0
        %391 = vmatpush1.msra.mxu0 0.0
        %392 = vmatprep.subr.mxu0 0.0
        %393 = vmatpush1.msra.mxu0 0.0
        %394 = vmatprep.subr.mxu0 0.0
        %395 = vmatpush1.msra.mxu0 0.0
        %396 = vmatprep.subr.mxu0 0.0
        %397 = vmatpush1.msra.mxu0 0.0
        %398 = vmatprep.subr.mxu0 0.0
        %399 = vmatpush1.msra.mxu0 0.0
        %400 = vmatprep.subr.mxu0 0.0
        %401 = vmatpush1.msra.mxu0 0.0
        %402 = vmatprep.subr.mxu0 0.0
        %403 = vmatpush1.msra.mxu0 0.0
        %404 = vmatprep.subr.mxu0 0.0
        %405 = vmatpush1.msra.mxu0 0.0
        %406 = vmatprep.subr.mxu0 0.0
        %407 = vmatpush1.msra.mxu0 0.0
        %408 = vmatprep.subr.mxu0 0.0
        %409 = vmatpush1.msra.mxu0 0.0
        %410 = vmatprep.subr.mxu0 0.0
        %411 = vmatpush1.msra.mxu0 0.0
        %412 = vmatprep.subr.mxu0 0.0
        %413 = vmatpush1.msra.mxu0 0.0
        %414 = vmatprep.subr.mxu0 0.0
        %415 = vmatpush1.msra.mxu0 0.0
        %416 = vmatprep.subr.mxu0 0.0
        %417 = vmatpush1.msra.mxu0 0.0
        %418 = vmatprep.subr.mxu0 0.0
        %419 = vmatpush1.msra.mxu0 0.0
        %420 = vmatprep.subr.mxu0 0.0
        %421 = vmatpush1.msra.mxu0 0.0
        %422 = vmatprep.subr.mxu0 0.0
        %423 = vmatpush1.msra.mxu0 0.0
        %424 = vmatprep.subr.mxu0 0.0
        %425 = vmatpush1.msra.mxu0 0.0
        %426 = vmatprep.subr.mxu0 0.0
        %427 = vmatpush1.msra.mxu0 0.0
        %428 = vmatprep.subr.mxu0 0.0
        %429 = vmatpush1.msra.mxu0 0.0
        %430 = vmatprep.mubr.f32.mxu0 0.0
        %431 = vmatmul.mubr.f32.gmra.mrb[0].mxu0 %v358
        %v432 = vpop.f32.mrb[0].mxu0
        %v433 = vadd.f32 %v349, %v432
        %v434 = vpop.f32.mrb[0].mxu0
        %435 = vmatprep.mubr.f32.mxu0 0.0
        %436 = vmatmul.mubr.f32.gmra.mrb[0].mxu0 %v361
        %v437 = vpop.f32.mrb[0].mxu0
        %v438 = vadd.f32 %v354, %v437
        %v439 = vpop.f32.mrb[0].mxu0
        %440 = vdwg.mxu0
        %v441 = vld [vmem:[%s233 + $0x2] sm:$0xff]
        %v442 = vld [vmem:[%s233 + $0xa] sm:$0xff]
        %s443 = scalar_lea.vmem [#allocation5], 8
        %v444 = vld [vmem:[%s443] sm:$0xf]
        %v446 = vsel %vm271, %v441, 0
        %v449 = vsel %vm271, %v442, 0
        %v452 = vsel %vm278, %v444, 0
        %454 = vmatprep.subr.mxu0 0.0
        %455 = vmatpush1.msra.mxu0 %v452
        %456 = vmatprep.subr.mxu0 0.0
        %457 = vmatpush1.msra.mxu0 0.0
        %458 = vmatprep.subr.mxu0 0.0
        %459 = vmatpush1.msra.mxu0 0.0
        %460 = vmatprep.subr.mxu0 0.0
        %461 = vmatpush1.msra.mxu0 0.0
        %462 = vmatprep.subr.mxu0 0.0
        %463 = vmatpush1.msra.mxu0 0.0
        %464 = vmatprep.subr.mxu0 0.0
        %465 = vmatpush1.msra.mxu0 0.0
        %466 = vmatprep.subr.mxu0 0.0
        %467 = vmatpush1.msra.mxu0 0.0
        %468 = vmatprep.subr.mxu0 0.0
        %469 = vmatpush1.msra.mxu0 0.0
        %470 = vmatprep.subr.mxu0 0.0
        %471 = vmatpush1.msra.mxu0 0.0
        %472 = vmatprep.subr.mxu0 0.0
        %473 = vmatpush1.msra.mxu0 0.0
        %474 = vmatprep.subr.mxu0 0.0
        %475 = vmatpush1.msra.mxu0 0.0
        %476 = vmatprep.subr.mxu0 0.0
        %477 = vmatpush1.msra.mxu0 0.0
        %478 = vmatprep.subr.mxu0 0.0
        %479 = vmatpush1.msra.mxu0 0.0
        %480 = vmatprep.subr.mxu0 0.0
        %481 = vmatpush1.msra.mxu0 0.0
        %482 = vmatprep.subr.mxu0 0.0
        %483 = vmatpush1.msra.mxu0 0.0
        %484 = vmatprep.subr.mxu0 0.0
        %485 = vmatpush1.msra.mxu0 0.0
        %486 = vmatprep.subr.mxu0 0.0
        %487 = vmatpush1.msra.mxu0 0.0
        %488 = vmatprep.subr.mxu0 0.0
        %489 = vmatpush1.msra.mxu0 0.0
        %490 = vmatprep.subr.mxu0 0.0
        %491 = vmatpush1.msra.mxu0 0.0
        %492 = vmatprep.subr.mxu0 0.0
        %493 = vmatpush1.msra.mxu0 0.0
        %494 = vmatprep.subr.mxu0 0.0
        %495 = vmatpush1.msra.mxu0 0.0
        %496 = vmatprep.subr.mxu0 0.0
        %497 = vmatpush1.msra.mxu0 0.0
        %498 = vmatprep.subr.mxu0 0.0
        %499 = vmatpush1.msra.mxu0 0.0
        %500 = vmatprep.subr.mxu0 0.0
        %501 = vmatpush1.msra.mxu0 0.0
        %502 = vmatprep.subr.mxu0 0.0
        %503 = vmatpush1.msra.mxu0 0.0
        %504 = vmatprep.subr.mxu0 0.0
        %505 = vmatpush1.msra.mxu0 0.0
        %506 = vmatprep.subr.mxu0 0.0
        %507 = vmatpush1.msra.mxu0 0.0
        %508 = vmatprep.subr.mxu0 0.0
        %509 = vmatpush1.msra.mxu0 0.0
        %510 = vmatprep.subr.mxu0 0.0
        %511 = vmatpush1.msra.mxu0 0.0
        %512 = vmatprep.subr.mxu0 0.0
        %513 = vmatpush1.msra.mxu0 0.0
        %514 = vmatprep.subr.mxu0 0.0
        %515 = vmatpush1.msra.mxu0 0.0
        %516 = vmatprep.subr.mxu0 0.0
        %517 = vmatpush1.msra.mxu0 0.0
        %518 = vmatprep.mubr.f32.mxu0 0.0
        %519 = vmatmul.mubr.f32.gmra.mrb[0].mxu0 %v446
        %v520 = vpop.f32.mrb[0].mxu0
        %v521 = vadd.f32 0.0, %v520
        %v522 = vpop.f32.mrb[0].mxu0
        %523 = vmatprep.mubr.f32.mxu0 0.0
        %524 = vmatmul.mubr.f32.gmra.mrb[0].mxu0 %v449
        %v525 = vpop.f32.mrb[0].mxu0
        %v526 = vadd.f32 0.0, %v525
        %v527 = vpop.f32.mrb[0].mxu0
        %528 = vdwg.mxu0
        %v529 = vadd.f32 %v433, %v521
        %v530 = vadd.f32 %v438, %v526
        %v531 = vld [vmem:[#allocation7] sm:$0x1]
        %v533 = vlaneseq
        %v534 = vshrl.u32 %v533, 7
        %v535 = vsub.s32 0, %v534
        %v536 = vrot.slane %v531, %v535
        %v538 = vadd.f32 %v529, %v536
        %v539 = vadd.f32 %v530, %v536
        %540 = vst [vmem:[%s263] sm:$0xff] %v538
        %541 = vst [vmem:[%s263 + $0x8] sm:$0xff] %v539
        %s542 = sand.u32 %s136, 1
        %s543 = scalar_lea.sflag [#allocation4], %s542
        %s544 = sand.u32 %s136, 1
        %s545 = smul.addr %s544, 16
        %s546 = scalar_lea.vmem [#allocation8], %s545
        // Predicated region
        $region45: #{tpu_custom_call.1} parent=31 // pred_check
          %p547 = pneg %p146
        $region46: #{tpu_custom_call.1} parent=31 // pred_check_branch
          %549 = sbr.rel (%p547) target = $region48
        $region47: #{tpu_custom_call.1} parent=31 // pred_region
          %s551 = ssub.s32 256, 256
          %552 = vsyncadd %s543, %s551
          %s553 = smul.addr %s28, 2
          %s554 = sadd.s32 %s27, %s553
          %s555 = smul.addr %s26, 4
          %s556 = sadd.s32 %s554, %s555
          %s557 = smul.addr %s556, 128
          %s558 = scalar_lea.hbm %s3, %s557
          %s559 = sshll.u32 %s546, 4
          %s560 = int_to_ptr.vmem [resolvable:$true] %s559
          %565 = dma.vmem_to_hbm [thread:$0]  %s560, 256, %s558, %s543, 128, 128, 8
        $region48: #{tpu_custom_call.1} parent=31 // pred_fallthru
          _
      $region32: #{tpu_custom_call.1} parent=5 // pred_fallthru
        _
      %p566 = scmp.le.s32.totalorder 2, %s16
      // Predicated region
      $region49: #{tpu_custom_call.1} parent=5 // pred_check
        %p567 = pneg %p566
      $region50: #{tpu_custom_call.1} parent=5 // pred_check_branch
        %569 = sbr.rel (%p567) target = $region52
      $region51: #{tpu_custom_call.1} parent=5 // pred_region
        %s570 = ssub.s32 %s16, 2
        // Predicated region
        $region53: #{tpu_custom_call.1} parent=51 // pred_check
          %p571 = pneg %p152
        $region54: #{tpu_custom_call.1} parent=51 // pred_check_branch
          %573 = sbr.rel (%p571) target = $region56
        $region55: #{tpu_custom_call.1} parent=51 // pred_region
          %s574 = sand.u32 %s137, 1
          %s575 = scalar_lea.sflag [#allocation4], %s574
          %s576 = sand.u32 %s137, 1
          %s577 = smul.addr %s576, 16
          %s578 = scalar_lea.vmem [#allocation8], %s577
          %579 = dma.done %s575, 256
        $region56: #{tpu_custom_call.1} parent=51 // pred_fallthru
          _
      $region52: #{tpu_custom_call.1} parent=5 // pred_fallthru
        _
    $region6: #{tpu_custom_call.1} parent=1 // loop_footer
      %s20 = sadd.s32 1, %s16
    $region7: #{tpu_custom_call.1} parent=1 // loop_footer_branch
      %15 = sbr.rel target = $region3
    $region8: #{tpu_custom_call.1} parent=1 // loop_exit
      _
    %580 = vsyncpa [#allocation3], 1
    %s581 = scalar_lea.sflag [#allocation3], 1
    %582 = vsyncpa %s581, 1
    %583 = vsyncpa [#allocation6], 1
    %584 = vsyncpa [#allocation4], 1
    %s585 = scalar_lea.sflag [#allocation4], 1
    %586 = vsyncpa %s585, 1

</llo_original>
